<compile_context>
chip_gen: v5e
topology: v5e:2x2
jax: 0.10.0
libtpu: 0.0.40
codegen_flags: <defaults>
</compile_context>

<pallas_src>
import jax
import jax.numpy as jnp
from jax import lax
from jax.experimental import pallas as pl
from jax.experimental.pallas import tpu as pltpu


def _round_up(x: int, m: int) -> int:
    return ((x + m - 1) // m) * m


def _cdiv(a: int, b: int) -> int:
    return (a + b - 1) // b


def _tpu_config():
    """(VMEM working-set budget, vmem_limit_bytes, preferred MXU N tile)."""
    gen = 0
    try:
        kind = jax.devices()[0].device_kind.lower()
        for g in (7, 6, 5, 4):
            if f"v{g}" in kind:
                gen = g
                break
    except Exception:
        pass
    mib = 1024 * 1024
    if gen >= 7:
        # v7x: 64 MiB physical VMEM per TC, 2x256x256 MXU.
        return 44 * mib, 56 * mib, 256
    if gen == 6:
        # v6e: 128 MiB VMEM, 2x256x256 MXU.
        return 80 * mib, 100 * mib, 256
    if gen > 0:
        # v5e (and older): 128 MiB VMEM but 16 MiB scoped default -> raise it;
        # 4x128x128 MXU so 128-wide N tiles are already full width.
        return 48 * mib, 64 * mib, 128
    # Unknown backend: conservative (v7x-like) limits.
    return 40 * mib, 56 * mib, 256


# --------------------------------------------------------------------------
# Kernels
# --------------------------------------------------------------------------

def _sim_kernel(f_ref, p_ref, psq_ref, fsq_ref, o_ref):
    # f_ref:   (TILE_B, D)        features tile
    # p_ref:   (TILE_P or P_out, D) prototypes tile (resident or streamed)
    # psq_ref: (1, TILE_P)        precomputed ||p||^2 (f32)
    # fsq_ref: (TILE_B, 1)        precomputed ||f||^2 (f32)
    cross = lax.dot_general(                      # MXU, f32 accumulation
        f_ref[...], p_ref[...],
        dimension_numbers=(((1,), (1,)), ((), ())),
        preferred_element_type=jnp.float32)
    d2 = fsq_ref[...] + psq_ref[...] - 2.0 * cross
    d2 = jnp.maximum(d2, 0.0)                     # guard cancellation
    o_ref[...] = (-jnp.sqrt(d2)).astype(o_ref.dtype)


def _sim_kernel_ksplit(f_ref, p_ref, psq_ref, fsq_ref, o_ref, acc_ref):
    # Same math as above but with the contraction (D) split over the last grid
    # axis, accumulated in an f32 VMEM scratch.
    k = pl.program_id(2)

    @pl.when(k == 0)
    def _init():
        acc_ref[...] = jnp.zeros_like(acc_ref)

    acc_ref[...] += lax.dot_general(
        f_ref[...], p_ref[...],
        dimension_numbers=(((1,), (1,)), ((), ())),
        preferred_element_type=jnp.float32)

    @pl.when(k == pl.num_programs(2) - 1)
    def _finalize():
        d2 = fsq_ref[...] + psq_ref[...] - 2.0 * acc_ref[...]
        d2 = jnp.maximum(d2, 0.0)
        o_ref[...] = (-jnp.sqrt(d2)).astype(o_ref.dtype)


# --------------------------------------------------------------------------
# Wrapper
# --------------------------------------------------------------------------

def prototype_memory_forward(features: jnp.ndarray,
                             prototypes: jnp.ndarray,
                             *,
                             _force_path: str | None = None,
                             _force_tiles: tuple | None = None) -> jnp.ndarray:
    """Matches PrototypeMemory.forward.

    features:   (B, D) or (B, D, L)
    prototypes: (P, D)
    returns:    (B, P) with sim[b, j] = -||features[b] - prototypes[j]||_2
    """
    if features.ndim == 3:
        # TODO(synk): for large L, fuse this mean into the kernel (reduce L on a
        # grid axis) instead of materializing the reduced (B, D) array in HBM.
        features = jnp.mean(features, axis=2)

    B, D = features.shape
    P, D2 = prototypes.shape
    assert D == D2, "feature dim mismatch"

    out_dtype = features.dtype
    fitem = jnp.dtype(features.dtype).itemsize
    pitem = jnp.dtype(prototypes.dtype).itemsize
    oitem = jnp.dtype(out_dtype).itemsize

    budget, vmem_limit, mxu_n = _tpu_config()

    # Lane-dense output: pad prototype rows (a cheap parameter copy) to a
    # multiple of 128 only when needed.  Features and D are never padded on the
    # resident / streamed paths.
    P_out = _round_up(P, 128)
    if P_out != P:
        p = jnp.zeros((P_out, D), prototypes.dtype).at[:P].set(prototypes)
    else:
        p = prototypes

    # Squared norms hoisted out of the kernel entirely (computed once per call).
    p_sq = jnp.sum(p.astype(jnp.float32) ** 2, axis=-1, keepdims=True).T   # (1, P_out)
    f_sq = jnp.sum(features.astype(jnp.float32) ** 2, axis=-1, keepdims=True)  # (B, 1)

    # ---------------- tile / path selection ----------------
    tile_b_candidates = (512, 384, 256, 192, 128, 96, 64, 32, 16, 8)

    def cost_resident(tb):
        return (2 * tb * D * fitem + 2 * P_out * D * pitem
                + 2 * tb * P_out * oitem + 2 * P_out * 4 + 2 * tb * 4)

    def cost_stream(tb, tp):
        return (2 * tb * D * fitem + 2 * tp * D * pitem
                + 2 * tb * tp * oitem + 2 * tp * 4 + 2 * tb * 4)

    def cost_ksplit(tb, tp, tk):
        return (2 * tb * tk * fitem + 2 * tp * tk * pitem
                + 2 * tb * tp * oitem + tb * tp * 4    # acc scratch
                + 2 * tp * 4 + 2 * tb * 4)

    def clamp_tile_b(tb):
        # A block equal to the full dim is always legal; otherwise keep the
        # tile a multiple of 8 and let cdiv handle a ragged last block.
        return B if B <= tb else tb

    if _force_path is not None:
        path = _force_path
        assert _force_tiles is not None, "_force_path requires _force_tiles"
        TILE_B, TILE_P, TILE_K = _force_tiles
        TILE_B = clamp_tile_b(TILE_B)
    else:
        path, TILE_B, TILE_P, TILE_K = None, None, None, None

        # Path A: prototypes fully resident in VMEM (read from HBM once).
        if 2 * P_out * D * pitem <= budget // 2:
            for tb in tile_b_candidates:
                if cost_resident(tb) <= budget:
                    path, TILE_B, TILE_P = "resident", clamp_tile_b(tb), P_out
                    break

        # Path B: stream prototype tiles; shrink TILE_B first, keep TILE_P at
        # MXU width (256 on v6e/v7x, 128 on v5e) when possible.
        if path is None:
            tp_options = [min(P_out, mxu_n)]
            if tp_options[0] > 128:
                tp_options.append(128)
            for tp in tp_options:
                for tb in tile_b_candidates:
                    if cost_stream(tb, tp) <= budget:
                        path, TILE_B, TILE_P = "stream", clamp_tile_b(tb), tp
                        break
                if path is not None:
                    break

        # Path C: very large D -> split the contraction over a third grid axis.
        if path is None:
            TILE_P = min(P_out, mxu_n)
            TILE_B = clamp_tile_b(128)
            TILE_K = 128
            for tk in (4096, 2048, 1024, 512, 256, 128):
                if cost_ksplit(max(TILE_B, 8), TILE_P, tk) <= budget:
                    TILE_K = tk
                    break
            path = "ksplit"

    compiler_params = lambda sem: pltpu.CompilerParams(
        dimension_semantics=sem, vmem_limit_bytes=vmem_limit)

    # ---------------- dispatch ----------------
    if path == "resident":
        nb = _cdiv(B, TILE_B)
        out = pl.pallas_call(
            _sim_kernel,
            out_shape=jax.ShapeDtypeStruct((B, P_out), out_dtype),
            grid_spec=pltpu.PrefetchScalarGridSpec(
                num_scalar_prefetch=0,
                grid=(nb,),
                in_specs=[
                    pl.BlockSpec((TILE_B, D), lambda i: (i, 0)),
                    pl.BlockSpec((P_out, D), lambda i: (0, 0)),   # resident
                    pl.BlockSpec((1, P_out), lambda i: (0, 0)),
                    pl.BlockSpec((TILE_B, 1), lambda i: (i, 0)),
                ],
                out_specs=pl.BlockSpec((TILE_B, P_out), lambda i: (i, 0)),
            ),
            compiler_params=compiler_params(("parallel",)),
        )(features, p, p_sq, f_sq)

    elif path == "stream":
        nb = _cdiv(B, TILE_B)
        npt = _cdiv(P_out, TILE_P)
        # Put the axis with more tiles first (v7x 2-TC sharding; the
        # inner-varying stream is the smaller one -> less re-streaming).
        if nb >= npt:
            grid = (nb, npt)
            fm = lambda i, j: (i, 0)
            pm = lambda i, j: (j, 0)
            qm = lambda i, j: (0, j)
            sm = lambda i, j: (i, 0)
            om = lambda i, j: (i, j)
        else:
            grid = (npt, nb)
            fm = lambda j, i: (i, 0)
            pm = lambda j, i: (j, 0)
            qm = lambda j, i: (0, j)
            sm = lambda j, i: (i, 0)
            om = lambda j, i: (i, j)
        out = pl.pallas_call(
            _sim_kernel,
            out_shape=jax.ShapeDtypeStruct((B, P_out), out_dtype),
            grid_spec=pltpu.PrefetchScalarGridSpec(
                num_scalar_prefetch=0,
                grid=grid,
                in_specs=[
                    pl.BlockSpec((TILE_B, D), fm),
                    pl.BlockSpec((TILE_P, D), pm),
                    pl.BlockSpec((1, TILE_P), qm),
                    pl.BlockSpec((TILE_B, 1), sm),
                ],
                out_specs=pl.BlockSpec((TILE_B, TILE_P), om),
            ),
            compiler_params=compiler_params(("parallel", "parallel")),
        )(features, p, p_sq, f_sq)

    else:  # "ksplit"
        D_pad = _round_up(D, TILE_K)
        if D_pad != D:
            f_k = jnp.zeros((B, D_pad), features.dtype).at[:, :D].set(features)
            p_k = jnp.zeros((P_out, D_pad), p.dtype).at[:, :D].set(p)
        else:
            f_k, p_k = features, p
        nb = _cdiv(B, TILE_B)
        npt = _cdiv(P_out, TILE_P)
        nk = D_pad // TILE_K
        out = pl.pallas_call(
            _sim_kernel_ksplit,
            out_shape=jax.ShapeDtypeStruct((B, P_out), out_dtype),
            grid_spec=pltpu.PrefetchScalarGridSpec(
                num_scalar_prefetch=0,
                grid=(nb, npt, nk),
                in_specs=[
                    pl.BlockSpec((TILE_B, TILE_K), lambda i, j, k: (i, k)),
                    pl.BlockSpec((TILE_P, TILE_K), lambda i, j, k: (j, k)),
                    pl.BlockSpec((1, TILE_P), lambda i, j, k: (0, j)),
                    pl.BlockSpec((TILE_B, 1), lambda i, j, k: (i, 0)),
                ],
                out_specs=pl.BlockSpec((TILE_B, TILE_P), lambda i, j, k: (i, j)),
                scratch_shapes=[pltpu.VMEM((TILE_B, TILE_P), jnp.float32)],
            ),
            compiler_params=compiler_params(("parallel", "parallel", "arbitrary")),
        )(f_k, p_k, p_sq, f_sq)

    return out[:, :P]


# --------------------------------------------------------------------------
# Self-test
# --------------------------------------------------------------------------

if __name__ == "__main__":
    key = jax.random.PRNGKey(0)
    k_proto, k_f3, k_f2, k_pb, k_fb, k_pc, k_fc = jax.random.split(key, 7)

    def ref(feats, protos):
        if feats.ndim == 3:
            feats = jnp.mean(feats, axis=2)
        diff = feats[:, None, :] - protos[None, :, :]
        return -jnp.sqrt(jnp.sum(diff * diff, axis=2))

    # Module-sized shapes: d_model=32, num_prototypes=8, batch=2, seq=8
    d_model, num_protos, batch, seq_len = 32, 8, 2, 8
    prototypes = jax.random.normal(k_proto, (num_protos, d_model), jnp.float32)
    feats3 = jax.random.normal(k_f3, (batch, d_model, seq_len), jnp.float32)
    feats2 = jax.random.normal(k_f2, (batch, d_model), jnp.float32)

    sim3 = jax.block_until_ready(prototype_memory_forward(feats3, prototypes))
    sim2 = jax.block_until_ready(prototype_memory_forward(feats2, prototypes))
    assert sim3.shape == (batch, num_protos)
    assert sim2.shape == (batch, num_protos)
    assert jnp.allclose(sim3, ref(feats3, prototypes), atol=1e-3, rtol=1e-4)
    assert jnp.allclose(sim2, ref(feats2, prototypes), atol=1e-3, rtol=1e-4)

    # Exercise the streamed-prototype path (2-D grid, P-outer ordering).
    pB = jax.random.normal(k_pb, (300, 64), jnp.float32)   # P_out = 384 -> 3 P tiles
    fB = jax.random.normal(k_fb, (16, 64), jnp.float32)    # 2 B tiles of 8
    simB = jax.block_until_ready(
        prototype_memory_forward(fB, pB, _force_path="stream",
                                 _force_tiles=(8, 128, None)))
    assert jnp.allclose(simB, ref(fB, pB), atol=1e-3, rtol=1e-4)

    # Exercise the D-split (accumulator) fallback path: 3 k-steps of 128.
    pC = jax.random.normal(k_pc, (8, 384), jnp.float32)
    fC = jax.random.normal(k_fc, (16, 384), jnp.float32)
    simC = jax.block_until_ready(
        prototype_memory_forward(fC, pC, _force_path="ksplit",
                                 _force_tiles=(8, 128, 128)))
    assert jnp.allclose(simC, ref(fC, pC), atol=1e-3, rtol=1e-4)

    print("KERNEL_OK")
</pallas_src>

<mosaic_0001>
module attributes {stable_mosaic.version = 11 : i64} {
  func.func @_sim_kernel(%arg0: i32, %arg1: memref<2x32xf32, #tpu.memory_space<vmem>>, %arg2: memref<128x32xf32, #tpu.memory_space<vmem>>, %arg3: memref<1x128xf32, #tpu.memory_space<vmem>>, %arg4: memref<2x1xf32, #tpu.memory_space<vmem>>, %arg5: memref<2x128xf32, #tpu.memory_space<vmem>>) attributes {dimension_semantics = [#tpu.dimension_semantics<parallel>], iteration_bounds = array<i64: 1>, scalar_prefetch = 0 : i64, scratch_operands = 0 : i64, tpu.core_type = #tpu.core_type<tc>, window_params = [{transform_indices = @transform_0, window_bounds = array<i64: 2, 32>}, {pipeline_mode = #tpu.pipeline_mode<synchronous>, transform_indices = @transform_1, window_bounds = array<i64: 128, 32>}, {pipeline_mode = #tpu.pipeline_mode<synchronous>, transform_indices = @transform_2, window_bounds = array<i64: 1, 128>}, {transform_indices = @transform_3, window_bounds = array<i64: 2, 1>}, {transform_indices = @transform_4, window_bounds = array<i64: 2, 128>}]} {
    %c0 = arith.constant 0 : index
    %c0_0 = arith.constant 0 : index
    %0 = vector.load %arg1[%c0, %c0_0] : memref<2x32xf32, #tpu.memory_space<vmem>>, vector<2x32xf32>
    %c0_1 = arith.constant 0 : index
    %c0_2 = arith.constant 0 : index
    %1 = vector.load %arg2[%c0_1, %c0_2] : memref<128x32xf32, #tpu.memory_space<vmem>>, vector<128x32xf32>
    %cst = arith.constant dense<0.000000e+00> : vector<2x128xf32>
    %2 = tpu.matmul %0, %1, %cst {dimension_numbers = #tpu.dot_dimension_numbers<[1], [1], [0], [0], [0, 0, 1, 0], [], []>} : vector<2x32xf32>, vector<128x32xf32>, vector<2x128xf32> -> vector<2x128xf32>
    %c0_3 = arith.constant 0 : index
    %c0_4 = arith.constant 0 : index
    %3 = vector.load %arg4[%c0_3, %c0_4] : memref<2x1xf32, #tpu.memory_space<vmem>>, vector<2x1xf32>
    %c0_5 = arith.constant 0 : index
    %c0_6 = arith.constant 0 : index
    %4 = vector.load %arg3[%c0_5, %c0_6] : memref<1x128xf32, #tpu.memory_space<vmem>>, vector<1x128xf32>
    %5 = vector.broadcast %3 : vector<2x1xf32> to vector<2x128xf32>
    %6 = vector.broadcast %4 : vector<1x128xf32> to vector<2x128xf32>
    %7 = arith.addf %5, %6 : vector<2x128xf32>
    %cst_7 = arith.constant 2.000000e+00 : f32
    %8 = vector.broadcast %cst_7 : f32 to vector<2x128xf32>
    %9 = arith.mulf %8, %2 : vector<2x128xf32>
    %10 = arith.subf %7, %9 : vector<2x128xf32>
    %cst_8 = arith.constant 0.000000e+00 : f32
    %11 = vector.broadcast %cst_8 : f32 to vector<2x128xf32>
    %12 = arith.maximumf %10, %11 : vector<2x128xf32>
    %13 = math.sqrt %12 : vector<2x128xf32>
    %cst_9 = arith.constant 0.000000e+00 : f32
    %14 = vector.broadcast %cst_9 : f32 to vector<2x128xf32>
    %15 = arith.subf %14, %13 : vector<2x128xf32>
    %c0_10 = arith.constant 0 : index
    %c0_11 = arith.constant 0 : index
    %16 = vector.load %arg5[%c0_10, %c0_11] : memref<2x128xf32, #tpu.memory_space<vmem>>, vector<2x128xf32>
    tpu.vector_store %arg5[%c0_10, %c0_11], %15 {strides = array<i32>} : memref<2x128xf32, #tpu.memory_space<vmem>>, vector<2x128xf32>,
    return
  }
  func.func @transform_0(%arg0: i32) -> (i32, i32) {
    %c0_i32 = arith.constant 0 : i32
    %c0_i32_0 = arith.constant 0 : i32
    return %arg0, %c0_i32 : i32, i32
  }
  func.func @transform_1(%arg0: i32) -> (i32, i32) {
    %c0_i32 = arith.constant 0 : i32
    %c0_i32_0 = arith.constant 0 : i32
    %c0_i32_1 = arith.constant 0 : i32
    return %c0_i32, %c0_i32_0 : i32, i32
  }
  func.func @transform_2(%arg0: i32) -> (i32, i32) {
    %c0_i32 = arith.constant 0 : i32
    %c0_i32_0 = arith.constant 0 : i32
    %c0_i32_1 = arith.constant 0 : i32
    return %c0_i32, %c0_i32_0 : i32, i32
  }
  func.func @transform_3(%arg0: i32) -> (i32, i32) {
    %c0_i32 = arith.constant 0 : i32
    %c0_i32_0 = arith.constant 0 : i32
    return %arg0, %c0_i32 : i32, i32
  }
  func.func @transform_4(%arg0: i32) -> (i32, i32) {
    %c0_i32 = arith.constant 0 : i32
    %c0_i32_0 = arith.constant 0 : i32
    return %arg0, %c0_i32 : i32, i32
  }
}

</mosaic_0001>

<llo_original>
// kernel: tpu_custom_call.1
$region0: #{tpu_custom_call.1}
  #allocation0 [shape = 'u32[]', space=smem, size = 0x4, offset = 0x4, fixed_abs, tag = 'smem constant byte address 0x4 - core index']
  #allocation1 [shape = 'u32[72,128]{1,0:T(1,128)}', space=vmem, size = 0x9000, scoped, tag = 'internal scratch']
  %s0 = inlined_call_operand.vmem [shape: f32[2,32], index: 0, kind: input, shape index: {}]
  %s1 = inlined_call_operand.vmem [shape: f32[128,32], index: 1, kind: input, shape index: {}]
  %s2 = inlined_call_operand.vmem [shape: f32[1,128], index: 2, kind: input, shape index: {}]
  %s3 = inlined_call_operand.vmem [shape: f32[2,1], index: 3, kind: input, shape index: {}]
  %s4 = inlined_call_operand.hbm [shape: f32[2,128], index: 4, kind: output, shape index: {}]
  %s5 = sld [smem:[#allocation0]]
  $region26: #{tpu_custom_call.1} parent=0
    _
  %s7 = ssub.s32 1, %s5
  %s8 = scalar_select 0, %s7, %s5
  $region1: #{tpu_custom_call.1} parent=0
    #allocation2 [shape = 'u8[1024]{0}', space=vmem, size = 0x400, scoped, tag = 'output window, operand 0, single buffered']
    #allocation3 [shape = 's32[1]{0}', space=sflag, size = 0x4, scoped, tag = 'scoped memory for tpu_custom_call.1']
    %9 = vsyncpa [#allocation3], 0
    // Predicated region
    $region2: #{tpu_custom_call.1} parent=1 // pred_check
      _
    $region3: #{tpu_custom_call.1} parent=1 // pred_check_branch
      %11 = sbr.rel (0) target = $region5
    $region4: #{tpu_custom_call.1} parent=1 // pred_region
      _
    $region5: #{tpu_custom_call.1} parent=1 // pred_fallthru
      _
    // Predicated region
    $region6: #{tpu_custom_call.1} parent=1 // pred_check
      _
    $region7: #{tpu_custom_call.1} parent=1 // pred_check_branch
      %13 = sbr.rel (0) target = $region9
    $region8: #{tpu_custom_call.1} parent=1 // pred_region
      _
    $region9: #{tpu_custom_call.1} parent=1 // pred_fallthru
      _
    // Predicated region
    $region10: #{tpu_custom_call.1} parent=1 // pred_check
      _
    $region11: #{tpu_custom_call.1} parent=1 // pred_check_branch
      %15 = sbr.rel (0) target = $region13
    $region12: #{tpu_custom_call.1} parent=1 // pred_region
      _
    $region13: #{tpu_custom_call.1} parent=1 // pred_fallthru
      _
    // Predicated region
    $region14: #{tpu_custom_call.1} parent=1 // pred_check
      _
    $region15: #{tpu_custom_call.1} parent=1 // pred_check_branch
      %17 = sbr.rel (0) target = $region17
    $region16: #{tpu_custom_call.1} parent=1 // pred_region
      _
    $region17: #{tpu_custom_call.1} parent=1 // pred_fallthru
      _
    %v18 = vld [vmem:[%s0] sm:$0x3]
    %v19 = vld [vmem:[%s1] sm:$0xff]
    %v20 = vld [vmem:[%s1 + $0x8] sm:$0xff]
    %v21 = vld [vmem:[%s1 + $0x10] sm:$0xff]
    %v22 = vld [vmem:[%s1 + $0x18] sm:$0xff]
    %v23 = vld [vmem:[%s1 + $0x20] sm:$0xff]
    %v24 = vld [vmem:[%s1 + $0x28] sm:$0xff]
    %v25 = vld [vmem:[%s1 + $0x30] sm:$0xff]
    %v26 = vld [vmem:[%s1 + $0x38] sm:$0xff]
    %v27 = vld [vmem:[%s1 + $0x40] sm:$0xff]
    %v28 = vld [vmem:[%s1 + $0x48] sm:$0xff]
    %v29 = vld [vmem:[%s1 + $0x50] sm:$0xff]
    %v30 = vld [vmem:[%s1 + $0x58] sm:$0xff]
    %v31 = vld [vmem:[%s1 + $0x60] sm:$0xff]
    %v32 = vld [vmem:[%s1 + $0x68] sm:$0xff]
    %v33 = vld [vmem:[%s1 + $0x70] sm:$0xff]
    %v34 = vld [vmem:[%s1 + $0x78] sm:$0xff]
    %vm35 = vcmask 261120
    %v37 = vsel %vm35, %v18, 0
    %v40 = vsel %vm35, %v19, 0
    %v43 = vsel %vm35, %v20, 0
    %v46 = vsel %vm35, %v21, 0
    %v49 = vsel %vm35, %v22, 0
    %v52 = vsel %vm35, %v23, 0
    %v55 = vsel %vm35, %v24, 0
    %v58 = vsel %vm35, %v25, 0
    %v61 = vsel %vm35, %v26, 0
    %v64 = vsel %vm35, %v27, 0
    %v67 = vsel %vm35, %v28, 0
    %v70 = vsel %vm35, %v29, 0
    %v73 = vsel %vm35, %v30, 0
    %v76 = vsel %vm35, %v31, 0
    %v79 = vsel %vm35, %v32, 0
    %v82 = vsel %vm35, %v33, 0
    %v85 = vsel %vm35, %v34, 0
    %87 = vmatpush.xpose.msra.mxu0 %v85
    %88 = vmatpush.xpose.msra.mxu0 %v82
    %89 = vmatpush.xpose.msra.mxu0 %v79
    %90 = vmatpush.xpose.msra.mxu0 %v76
    %91 = vmatpush.xpose.msra.mxu0 %v73
    %92 = vmatpush.xpose.msra.mxu0 %v70
    %93 = vmatpush.xpose.msra.mxu0 %v67
    %94 = vmatpush.xpose.msra.mxu0 %v64
    %95 = vmatpush.xpose.msra.mxu0 %v61
    %96 = vmatpush.xpose.msra.mxu0 %v58
    %97 = vmatpush.xpose.msra.mxu0 %v55
    %98 = vmatpush.xpose.msra.mxu0 %v52
    %99 = vmatpush.xpose.msra.mxu0 %v49
    %100 = vmatpush.xpose.msra.mxu0 %v46
    %101 = vmatpush.xpose.msra.mxu0 %v43
    %102 = vmatpush.xpose.msra.mxu0 %v40
    %103 = vmatmul.f32.gmra.mxu0 %v37
    %v104 = vpop.f32.mrf.mxu0
    %v105 = vadd.f32 0.0, %v104
    %106 = vdwg.mxu0
    %v107 = vld [vmem:[%s3] sm:$0x3]
    %v108 = vld [vmem:[%s2] sm:$0x1]
    %110 = vset.pattern.permute.xlu0 0
    %111 = vperm.xlu0 %110, %v107
    %v112 = vpop.permute.xlu0 %111
    %v115 = vperm.slane %v108, 0
    %v117 = vadd.f32 %v112, %v115
    %v118 = vmul.f32 %v105, 2.0
    %v119 = vsub.f32 %v117, %v118
    %v120 = vmax.f32 %v119, 0.0
    %v121 = vrsqrt.pop %v120
    %v122 = vmul.f32 %v121, %v120
    %v123 = vmul.f32 %v122, %v121
    %v124 = vmul.f32 0.5, %v123
    %v125 = vsub.f32 1.5, %v124
    %v126 = vmul.f32 %v121, %v125
    %v127 = vmul.f32 %v120, %v126
    %vm128 = vcmp.eq.f32.partialorder %v120, inf
    %v129 = vsel %vm128, %v120, %v127
    %vm130 = vcmp.eq.f32.partialorder %v120, 0.0
    %v131 = vand.u32 %v120, 2147483648
    %v132 = vsel %vm130, %v131, %v129
    %v133 = vsub.f32 0.0, %v132
    %134 = vst [vmem:[#allocation2] sm:$0x3] %v133
    // Predicated region
    $region18: #{tpu_custom_call.1} parent=1 // pred_check
      _
    $region19: #{tpu_custom_call.1} parent=1 // pred_check_branch
      %136 = sbr.rel (0) target = $region21
    $region20: #{tpu_custom_call.1} parent=1 // pred_region
      %138 = vsyncadd [#allocation3], 0
      %s140 = sshll.u32 [#allocation2], 4
      %s141 = int_to_ptr.vmem [resolvable:$true] %s140
      %s142 = sshll.u32 %s4, 4
      %s143 = int_to_ptr.hbm [resolvable:$true] %s142
      %145 = dma.vmem_to_hbm [thread:$0]  %s141, 32, %s143, [#allocation3]
    $region21: #{tpu_custom_call.1} parent=1 // pred_fallthru
      _
    // Predicated region
    $region22: #{tpu_custom_call.1} parent=1 // pred_check
      _
    $region23: #{tpu_custom_call.1} parent=1 // pred_check_branch
      %147 = sbr.rel (0) target = $region25
    $region24: #{tpu_custom_call.1} parent=1 // pred_region
      %149 = dma.done [#allocation3], 32
    $region25: #{tpu_custom_call.1} parent=1 // pred_fallthru
      _
    %150 = vsyncpa [#allocation3], 1

</llo_original>
